<compile_context>
chip_gen: v6e
topology: v6e:2x2x1
jax: 0.10.0
libtpu: 0.0.40
codegen_flags: <defaults>
</compile_context>

<pallas_src>
import jax
import jax.numpy as jnp
from jax.experimental import pallas as pl
from jax.experimental.pallas import tpu as pltpu

_LANE = 512             # lane-dense last dim (multiple of 128)
_MAX_BLOCK_ROWS = 1024  # sublane tile (multiple of 8); 1024x512 f32 = 2 MiB/buffer


def _apply_static_power(x, power):
    """x ** power with a *static* Python-float exponent, specialized."""
    p = float(power)
    if p == 1.0:
        return x
    if p == 0.0:
        return jnp.ones_like(x)
    if p == 0.5:
        return jnp.sqrt(x)
    if p == -1.0:
        return 1.0 / x
    if p == int(p) and abs(int(p)) <= 16:
        # integer power -> multiply chain on the VPU (exponentiation by squaring)
        e = abs(int(p))
        base = x
        acc = None
        while e > 0:
            if e & 1:
                acc = base if acc is None else acc * base
            e >>= 1
            if e > 0:
                base = base * base
        if int(p) < 0:
            acc = 1.0 / acc
        return acc
    # true fractional power: fall back (static exponent, lowered by XLA/Mosaic)
    return jnp.power(x, p)


def _make_static_power_kernel(power, scale, offset):
    power = float(power)
    scale = float(scale)
    offset = float(offset)

    def kernel(x_ref, o_ref):
        x = x_ref[...].astype(jnp.float32)
        y = _apply_static_power(x, power)
        if scale != 1.0:
            y = y * scale
        if offset != 0.0:
            y = y + offset
        o_ref[...] = y.astype(o_ref.dtype)

    return kernel


def static_power_forward(pixels, power=1.0, scale=1.0, offset=0.0):
    """pixels: [N, C, H, W] -> [N, C, H, W], same dtype as input."""
    n, c, h, w = pixels.shape
    dtype = pixels.dtype
    total = n * c * h * w

    # Flatten to 1-D and view as a lane-dense [rows, _LANE] slab (pad tail).
    rows = pl.cdiv(total, _LANE)
    block_rows = min(_MAX_BLOCK_ROWS, pl.cdiv(rows, 8) * 8)
    rows_padded = pl.cdiv(rows, block_rows) * block_rows
    padded_total = rows_padded * _LANE

    flat = pixels.reshape(-1)
    if padded_total != total:
        flat = jnp.pad(flat, (0, padded_total - total))
    slab = flat.reshape(rows_padded, _LANE)

    grid = (rows_padded // block_rows,)
    kernel = _make_static_power_kernel(power, scale, offset)

    out_slab = pl.pallas_call(
        kernel,
        out_shape=jax.ShapeDtypeStruct((rows_padded, _LANE), dtype),
        grid=grid,
        in_specs=[pl.BlockSpec((block_rows, _LANE), lambda i: (i, 0))],
        out_specs=pl.BlockSpec((block_rows, _LANE), lambda i: (i, 0)),
        compiler_params=pltpu.CompilerParams(
            dimension_semantics=("parallel",),
        ),
    )(slab)

    return out_slab.reshape(-1)[:total].reshape(n, c, h, w)


if __name__ == "__main__":
    key = jax.random.PRNGKey(0)
    # Small NCHW input, non-negative so fractional powers are well-defined.
    x = jax.random.uniform(key, (2, 4, 16, 16), dtype=jnp.float32)

    # Integer-power path (specialized to x*x on the VPU).
    power, scale, offset = 2.0, 1.5, 0.25
    out = static_power_forward(x, power=power, scale=scale, offset=offset)
    out = jax.block_until_ready(out)
    ref = jnp.power(x, power) * scale + offset
    assert out.shape == x.shape
    assert out.dtype == x.dtype
    assert jnp.allclose(out, ref, atol=1e-5, rtol=1e-5)

    # Fractional-power path (sqrt specialization).
    out2 = static_power_forward(x, power=0.5, scale=2.0, offset=-0.1)
    out2 = jax.block_until_ready(out2)
    ref2 = jnp.power(x, 0.5) * 2.0 + (-0.1)
    assert jnp.allclose(out2, ref2, atol=1e-5, rtol=1e-5)

    # Identity-power path (defaults: power=1, scale=1, offset=0).
    out3 = static_power_forward(x, power=1.0, scale=1.0, offset=0.0)
    out3 = jax.block_until_ready(out3)
    assert jnp.allclose(out3, x, atol=1e-6, rtol=1e-6)

    print("KERNEL_OK")
</pallas_src>

<mosaic_0001>
module attributes {stable_mosaic.version = 11 : i64} {
  func.func @kernel(%arg0: i32, %arg1: memref<8x512xf32, #tpu.memory_space<vmem>>, %arg2: memref<8x512xf32, #tpu.memory_space<vmem>>) attributes {dimension_semantics = [#tpu.dimension_semantics<parallel>], iteration_bounds = array<i64: 1>, scalar_prefetch = 0 : i64, scratch_operands = 0 : i64, tpu.core_type = #tpu.core_type<tc>, window_params = [{transform_indices = @transform_0, window_bounds = array<i64: 8, 512>}, {transform_indices = @transform_1, window_bounds = array<i64: 8, 512>}]} {
    %c0 = arith.constant 0 : index
    %c0_0 = arith.constant 0 : index
    %0 = vector.load %arg1[%c0, %c0_0] : memref<8x512xf32, #tpu.memory_space<vmem>>, vector<8x512xf32>
    %1 = arith.mulf %0, %0 : vector<8x512xf32>
    %cst = arith.constant 1.500000e+00 : f32
    %2 = vector.broadcast %cst : f32 to vector<8x512xf32>
    %3 = arith.mulf %1, %2 : vector<8x512xf32>
    %cst_1 = arith.constant 2.500000e-01 : f32
    %4 = vector.broadcast %cst_1 : f32 to vector<8x512xf32>
    %5 = arith.addf %3, %4 : vector<8x512xf32>
    %c0_2 = arith.constant 0 : index
    %c0_3 = arith.constant 0 : index
    %6 = vector.load %arg2[%c0_2, %c0_3] : memref<8x512xf32, #tpu.memory_space<vmem>>, vector<8x512xf32>
    tpu.vector_store %arg2[%c0_2, %c0_3], %5 {strides = array<i32>} : memref<8x512xf32, #tpu.memory_space<vmem>>, vector<8x512xf32>,
    return
  }
  func.func @transform_0(%arg0: i32) -> (i32, i32) {
    %c0_i32 = arith.constant 0 : i32
    %c0_i32_0 = arith.constant 0 : i32
    return %arg0, %c0_i32 : i32, i32
  }
  func.func @transform_1(%arg0: i32) -> (i32, i32) {
    %c0_i32 = arith.constant 0 : i32
    %c0_i32_0 = arith.constant 0 : i32
    return %arg0, %c0_i32 : i32, i32
  }
}

</mosaic_0001>

<llo_original>
// kernel: tpu_custom_call.1
$region0: #{tpu_custom_call.1}
  #allocation0 [shape = 'u32[]', space=smem, size = 0x4, offset = 0x4, fixed_abs, tag = 'smem constant byte address 0x4 - core index']
  #allocation1 [shape = 'u32[144,128]{1,0:T(1,128)}', space=vmem, size = 0x12000, scoped, tag = 'internal scratch']
  %s0 = inlined_call_operand.hbm [shape: f32[8,512], index: 0, kind: input, shape index: {}]
  %s1 = inlined_call_operand.hbm [shape: f32[8,512], index: 1, kind: output, shape index: {}]
  %s2 = sld [smem:[#allocation0]]
  $region18: #{tpu_custom_call.1} parent=0
    _
  %s4 = ssub.s32 1, %s2
  %s5 = scalar_select 0, %s4, %s2
  $region1: #{tpu_custom_call.1} parent=0
    #allocation2 [shape = 'u8[16384]{0}', space=vmem, size = 0x4000, scoped, tag = 'input window, operand 0, single buffered']
    #allocation3 [shape = 's32[1]{0}', space=sflag, size = 0x4, scoped, tag = 'scoped memory for tpu_custom_call.1']
    #allocation4 [shape = 's32[1]{0}', space=sflag, size = 0x4, scoped, tag = 'scoped memory for tpu_custom_call.1']
    #allocation5 [shape = 'u8[16384]{0}', space=vmem, size = 0x4000, scoped, tag = 'output window, operand 0, single buffered']
    %6 = vsyncpa [#allocation3], 0
    %7 = vsyncpa [#allocation4], 0
    // Predicated region
    $region2: #{tpu_custom_call.1} parent=1 // pred_check
      _
    $region3: #{tpu_custom_call.1} parent=1 // pred_check_branch
      %9 = sbr.rel (0) target = $region5
    $region4: #{tpu_custom_call.1} parent=1 // pred_region
      %s11 = ssub.s32 512, 512
      %12 = vsyncadd [#allocation3], %s11
      %s14 = sshll.u32 [#allocation2], 4
      %s15 = int_to_ptr.vmem [resolvable:$true] %s14
      %17 = dma.hbm_to_vmem [thread:$0]  %s0, 512, %s15, [#allocation3]
    $region5: #{tpu_custom_call.1} parent=1 // pred_fallthru
      _
    // Predicated region
    $region6: #{tpu_custom_call.1} parent=1 // pred_check
      _
    $region7: #{tpu_custom_call.1} parent=1 // pred_check_branch
      %19 = sbr.rel (0) target = $region9
    $region8: #{tpu_custom_call.1} parent=1 // pred_region
      %20 = dma.done [#allocation3], 512
    $region9: #{tpu_custom_call.1} parent=1 // pred_fallthru
      _
    %v21 = vld [vmem:[#allocation2] sm:$0xff]
    %v22 = vld [vmem:[#allocation2 + $0x8] sm:$0xff]
    %v23 = vld [vmem:[#allocation2 + $0x10] sm:$0xff]
    %v24 = vld [vmem:[#allocation2 + $0x18] sm:$0xff]
    %v25 = vmul.f32 %v21, %v21
    %v26 = vmul.f32 %v22, %v22
    %v27 = vmul.f32 %v23, %v23
    %v28 = vmul.f32 %v24, %v24
    %v29 = vmul.f32 %v25, 1.5
    %v30 = vmul.f32 %v26, 1.5
    %v31 = vmul.f32 %v27, 1.5
    %v32 = vmul.f32 %v28, 1.5
    %v33 = vadd.f32 %v29, 0.25
    %v34 = vadd.f32 %v30, 0.25
    %v35 = vadd.f32 %v31, 0.25
    %v36 = vadd.f32 %v32, 0.25
    %37 = vst [vmem:[#allocation5] sm:$0xff] %v33
    %38 = vst [vmem:[#allocation5 + $0x8] sm:$0xff] %v34
    %39 = vst [vmem:[#allocation5 + $0x10] sm:$0xff] %v35
    %40 = vst [vmem:[#allocation5 + $0x18] sm:$0xff] %v36
    // Predicated region
    $region10: #{tpu_custom_call.1} parent=1 // pred_check
      _
    $region11: #{tpu_custom_call.1} parent=1 // pred_check_branch
      %42 = sbr.rel (0) target = $region13
    $region12: #{tpu_custom_call.1} parent=1 // pred_region
      %s44 = ssub.s32 512, 512
      %45 = vsyncadd [#allocation4], %s44
      %s47 = sshll.u32 [#allocation5], 4
      %s48 = int_to_ptr.vmem [resolvable:$true] %s47
      %50 = dma.vmem_to_hbm [thread:$0]  %s48, 512, %s1, [#allocation4]
    $region13: #{tpu_custom_call.1} parent=1 // pred_fallthru
      _
    // Predicated region
    $region14: #{tpu_custom_call.1} parent=1 // pred_check
      _
    $region15: #{tpu_custom_call.1} parent=1 // pred_check_branch
      %52 = sbr.rel (0) target = $region17
    $region16: #{tpu_custom_call.1} parent=1 // pred_region
      %53 = dma.done [#allocation4], 512
    $region17: #{tpu_custom_call.1} parent=1 // pred_fallthru
      _
    %54 = vsyncpa [#allocation3], 1
    %55 = vsyncpa [#allocation4], 1

</llo_original>
